<compile_context>
chip_gen: v7x
topology: tpu7x:2x2x1
jax: 0.10.0
libtpu: 0.0.40
codegen_flags: <defaults>
</compile_context>

<pallas_src>
import functools

import jax
import jax.numpy as jnp
from jax import lax
from jax.experimental import pallas as pl
from jax.experimental.pallas import tpu as pltpu

LEAKY_SLOPE = 0.2
TILE_M_MAX = 512          # output-lane tile (multiple of 128)

# (stride, pad, KH, KW, activation) for the four conv layers.
_LAYER_CFG = (
    (2, 1, 4, 4, "leaky_relu"),
    (2, 1, 4, 4, "leaky_relu"),
    (2, 1, 3, 3, "leaky_relu"),
    (1, 0, 4, 4, "sigmoid"),
)


def _round_up(x, m):
    return (x + m - 1) // m * m


# ----------------------------- Pallas kernel -------------------------------
def _matmul_act_kernel(w_ref, p_ref, o_ref, *, act):
    # (Cout, K) @ (K, TILE_M) -> (Cout, TILE_M); bf16 operands, f32 accumulate.
    acc = jnp.dot(w_ref[...], p_ref[...], preferred_element_type=jnp.float32)
    if act == "leaky_relu":
        acc = jnp.where(acc >= 0.0, acc, LEAKY_SLOPE * acc)
    elif act == "sigmoid":
        # exp -> EUP slot; approx reciprocal -> EUP slot (keeps the VPU free).
        acc = pl.reciprocal(1.0 + jnp.exp(-acc), approx=True)
    o_ref[...] = acc


def matmul_act(w_flat, patches, act):
    """w_flat: (Cout, K) bf16, patches: (K, M) bf16 -> (Cout, M) f32."""
    cout, k = w_flat.shape
    k2, m = patches.shape
    assert k == k2
    tile_m = min(TILE_M_MAX, _round_up(m, 128))
    grid = (pl.cdiv(m, tile_m),)
    return pl.pallas_call(
        functools.partial(_matmul_act_kernel, act=act),
        out_shape=jax.ShapeDtypeStruct((cout, m), jnp.float32),
        grid=grid,
        in_specs=[
            pl.BlockSpec((cout, k), lambda j: (0, 0)),     # weights stay resident
            pl.BlockSpec((k, tile_m), lambda j: (0, j)),   # patches tiled along M
        ],
        out_specs=pl.BlockSpec((cout, tile_m), lambda j: (0, j)),
        compiler_params=pltpu.CompilerParams(
            dimension_semantics=("parallel",),   # shard M tiles across cores
            vmem_limit_bytes=64 * 1024 * 1024,   # sized for v7x's 64 MiB VMEM
            allow_input_fusion=[False, True],    # fuse the im2col producer
        ),
    )(w_flat, patches)


# ------------------------------ Conv wrapper --------------------------------
def _im2col_cm(x_cm, kh, kw, stride, pad):
    """Channel-major im2col.  x_cm: (C, N, H, W) f32 -> ((KH*KW*C), N*OH*OW) bf16."""
    c, n, h, w = x_cm.shape
    oh = (h + 2 * pad - kh) // stride + 1
    ow = (w + 2 * pad - kw) // stride + 1
    xp = jnp.pad(x_cm.astype(jnp.bfloat16),
                 ((0, 0), (0, 0), (pad, pad), (pad, pad)))
    cols = []
    for i in range(kh):
        for j in range(kw):
            cols.append(xp[:, :, i:i + oh * stride:stride,
                           j:j + ow * stride:stride])      # (C, N, OH, OW)
    p = jnp.stack(cols, axis=0)                            # (KH*KW, C, N, OH, OW)
    return p.reshape(kh * kw * c, n * oh * ow), oh, ow


@jax.jit
def discriminator_forward(kernel_params, x_nchw):
    """kernel_params: tuple of (Cout, KH*KW*Cin) bf16 weights; x: NCHW f32."""
    x = jnp.transpose(x_nchw, (1, 0, 2, 3))                # NCHW -> (C, N, H, W)
    for w_flat, (s, pd, kh, kw, act) in zip(kernel_params, _LAYER_CFG):
        n = x.shape[1]
        patches, oh, ow = _im2col_cm(x, kh, kw, s, pd)     # (K, M) bf16
        y = matmul_act(w_flat, patches, act)               # (Cout, M) f32
        x = y.reshape(w_flat.shape[0], n, oh, ow)          # stays channel-major
    return jnp.transpose(x, (1, 0, 2, 3))                  # -> (N, 1, 1, 1)


# ---------------------------- Parameters ------------------------------------
def init_discriminator_params(key, nc, ndf):
    k1, k2, k3, k4 = jax.random.split(key, 4)
    # DCGAN-style init: N(0, 0.02), OIHW like PyTorch.
    w1 = 0.02 * jax.random.normal(k1, (ndf, nc, 4, 4), jnp.float32)
    w2 = 0.02 * jax.random.normal(k2, (ndf * 2, ndf, 4, 4), jnp.float32)
    w3 = 0.02 * jax.random.normal(k3, (ndf * 4, ndf * 2, 3, 3), jnp.float32)
    w4 = 0.02 * jax.random.normal(k4, (1, ndf * 4, 4, 4), jnp.float32)
    return (w1, w2, w3, w4)


def prepare_kernel_params(params_oihw):
    """One-time weight prep: OIHW -> (Cout, KH*KW*Cin) bf16, K order = (kh, kw, ci)."""
    out = []
    for w in params_oihw:
        o, i, kh, kw = w.shape
        wf = jnp.transpose(w, (0, 2, 3, 1)).reshape(o, kh * kw * i)
        out.append(wf.astype(jnp.bfloat16))
    return tuple(out)


# --------------------------- Pure-JAX reference ------------------------------
def _ref_forward(params_oihw, x_nchw):
    # Mixed-precision reference matching the kernel numerics:
    # bf16 conv operands, f32 accumulation and activations.
    x = x_nchw
    for w, (s, pd, _, _, act) in zip(params_oihw, _LAYER_CFG):
        y = lax.conv_general_dilated(
            x.astype(jnp.bfloat16), w.astype(jnp.bfloat16),
            (s, s), [(pd, pd), (pd, pd)],
            dimension_numbers=("NCHW", "OIHW", "NCHW"),
            preferred_element_type=jnp.float32)
        if act == "leaky_relu":
            x = jnp.where(y >= 0.0, y, LEAKY_SLOPE * y)
        else:
            x = jax.nn.sigmoid(y)
    return x


if __name__ == "__main__":
    # Smallest spatial size for which the final 4x4 valid conv is defined with
    # this stride stack: 32 (32 -> 16 -> 8 -> 4 -> 1).
    batch, nc, ndf, spatial = 2, 3, 8, 32

    key = jax.random.PRNGKey(0)
    kx, kp = jax.random.split(key)
    x = jax.random.normal(kx, (batch, nc, spatial, spatial), jnp.float32)
    params = init_discriminator_params(kp, nc, ndf)      # f32 OIHW (PyTorch layout)
    kparams = prepare_kernel_params(params)              # flattened bf16, done once

    out = jax.block_until_ready(discriminator_forward(kparams, x))
    assert out.shape == (batch, 1, 1, 1), out.shape

    ref = jax.block_until_ready(_ref_forward(params, x))
    max_err = float(jnp.max(jnp.abs(out - ref)))
    # bf16 MXU operands + EUP approx reciprocal in the sigmoid; outputs are in
    # (0, 1), so 1e-2 absolute still meaningfully validates the conv stack.
    assert max_err < 1e-2, max_err

    print("KERNEL_OK")
</pallas_src>

<mosaic_0001>
module attributes {stable_mosaic.version = 11 : i64} {
  func.func @_matmul_act_kernel(%arg0: i32, %arg1: memref<8x48xbf16, #tpu.memory_space<vmem>>, %arg2: memref<48x512xbf16, #tpu.memory_space<vmem>>, %arg3: memref<8x512xf32, #tpu.memory_space<vmem>>) attributes {dimension_semantics = [#tpu.dimension_semantics<parallel>], iteration_bounds = array<i64: 1>, scalar_prefetch = 0 : i64, scratch_operands = 0 : i64, tpu.core_type = #tpu.core_type<tc>, window_params = [{pipeline_mode = #tpu.pipeline_mode<synchronous>, transform_indices = @transform_0, window_bounds = array<i64: 8, 48>}, {transform_indices = @transform_1, window_bounds = array<i64: 48, 512>}, {transform_indices = @transform_2, window_bounds = array<i64: 8, 512>}]} {
    %c0 = arith.constant 0 : index
    %c0_0 = arith.constant 0 : index
    %0 = vector.load %arg1[%c0, %c0_0] : memref<8x48xbf16, #tpu.memory_space<vmem>>, vector<8x48xbf16>
    %c0_1 = arith.constant 0 : index
    %c0_2 = arith.constant 0 : index
    %1 = vector.load %arg2[%c0_1, %c0_2] : memref<48x512xbf16, #tpu.memory_space<vmem>>, vector<48x512xbf16>
    %cst = arith.constant dense<0.000000e+00> : vector<8x512xf32>
    %2 = tpu.matmul %0, %1, %cst {dimension_numbers = #tpu.dot_dimension_numbers<[1], [0], [0], [1], [0, 0, 1, 1], [], []>} : vector<8x48xbf16>, vector<48x512xbf16>, vector<8x512xf32> -> vector<8x512xf32>
    %cst_3 = arith.constant 0.000000e+00 : f32
    %3 = vector.broadcast %cst_3 : f32 to vector<8x512xf32>
    %4 = arith.cmpf oge, %2, %3 : vector<8x512xf32>
    %cst_4 = arith.constant 2.000000e-01 : f32
    %5 = vector.broadcast %cst_4 : f32 to vector<8x512xf32>
    %6 = arith.mulf %5, %2 : vector<8x512xf32>
    %7 = arith.select %4, %2, %6 : vector<8x512xi1>, vector<8x512xf32>
    %c0_5 = arith.constant 0 : index
    %c0_6 = arith.constant 0 : index
    %8 = vector.load %arg3[%c0_5, %c0_6] : memref<8x512xf32, #tpu.memory_space<vmem>>, vector<8x512xf32>
    tpu.vector_store %arg3[%c0_5, %c0_6], %7 {strides = array<i32>} : memref<8x512xf32, #tpu.memory_space<vmem>>, vector<8x512xf32>,
    return
  }
  func.func @transform_0(%arg0: i32) -> (i32, i32) {
    %c0_i32 = arith.constant 0 : i32
    %c0_i32_0 = arith.constant 0 : i32
    %c0_i32_1 = arith.constant 0 : i32
    return %c0_i32, %c0_i32_0 : i32, i32
  }
  func.func @transform_1(%arg0: i32) -> (i32, i32) {
    %c0_i32 = arith.constant 0 : i32
    %c0_i32_0 = arith.constant 0 : i32
    return %c0_i32, %arg0 : i32, i32
  }
  func.func @transform_2(%arg0: i32) -> (i32, i32) {
    %c0_i32 = arith.constant 0 : i32
    %c0_i32_0 = arith.constant 0 : i32
    return %c0_i32, %arg0 : i32, i32
  }
}

module attributes {stable_mosaic.version = 11 : i64} {
  func.func @_matmul_act_kernel(%arg0: i32, %arg1: memref<16x128xbf16, #tpu.memory_space<vmem>>, %arg2: memref<128x128xbf16, #tpu.memory_space<vmem>>, %arg3: memref<16x128xf32, #tpu.memory_space<vmem>>) attributes {dimension_semantics = [#tpu.dimension_semantics<parallel>], iteration_bounds = array<i64: 1>, scalar_prefetch = 0 : i64, scratch_operands = 0 : i64, tpu.core_type = #tpu.core_type<tc>, window_params = [{pipeline_mode = #tpu.pipeline_mode<synchronous>, transform_indices = @transform_0, window_bounds = array<i64: 16, 128>}, {transform_indices = @transform_1, window_bounds = array<i64: 128, 128>}, {transform_indices = @transform_2, window_bounds = array<i64: 16, 128>}]} {
    %c0 = arith.constant 0 : index
    %c0_0 = arith.constant 0 : index
    %0 = vector.load %arg1[%c0, %c0_0] : memref<16x128xbf16, #tpu.memory_space<vmem>>, vector<16x128xbf16>
    %c0_1 = arith.constant 0 : index
    %c0_2 = arith.constant 0 : index
    %1 = vector.load %arg2[%c0_1, %c0_2] : memref<128x128xbf16, #tpu.memory_space<vmem>>, vector<128x128xbf16>
    %cst = arith.constant dense<0.000000e+00> : vector<16x128xf32>
    %2 = tpu.matmul %0, %1, %cst {dimension_numbers = #tpu.dot_dimension_numbers<[1], [0], [0], [1], [0, 0, 1, 1], [], []>} : vector<16x128xbf16>, vector<128x128xbf16>, vector<16x128xf32> -> vector<16x128xf32>
    %cst_3 = arith.constant 0.000000e+00 : f32
    %3 = vector.broadcast %cst_3 : f32 to vector<16x128xf32>
    %4 = arith.cmpf oge, %2, %3 : vector<16x128xf32>
    %cst_4 = arith.constant 2.000000e-01 : f32
    %5 = vector.broadcast %cst_4 : f32 to vector<16x128xf32>
    %6 = arith.mulf %5, %2 : vector<16x128xf32>
    %7 = arith.select %4, %2, %6 : vector<16x128xi1>, vector<16x128xf32>
    %c0_5 = arith.constant 0 : index
    %c0_6 = arith.constant 0 : index
    %8 = vector.load %arg3[%c0_5, %c0_6] : memref<16x128xf32, #tpu.memory_space<vmem>>, vector<16x128xf32>
    tpu.vector_store %arg3[%c0_5, %c0_6], %7 {strides = array<i32>} : memref<16x128xf32, #tpu.memory_space<vmem>>, vector<16x128xf32>,
    return
  }
  func.func @transform_0(%arg0: i32) -> (i32, i32) {
    %c0_i32 = arith.constant 0 : i32
    %c0_i32_0 = arith.constant 0 : i32
    %c0_i32_1 = arith.constant 0 : i32
    return %c0_i32, %c0_i32_0 : i32, i32
  }
  func.func @transform_1(%arg0: i32) -> (i32, i32) {
    %c0_i32 = arith.constant 0 : i32
    %c0_i32_0 = arith.constant 0 : i32
    return %c0_i32, %arg0 : i32, i32
  }
  func.func @transform_2(%arg0: i32) -> (i32, i32) {
    %c0_i32 = arith.constant 0 : i32
    %c0_i32_0 = arith.constant 0 : i32
    return %c0_i32, %arg0 : i32, i32
  }
}

module attributes {stable_mosaic.version = 11 : i64} {
  func.func @_matmul_act_kernel(%arg0: i32, %arg1: memref<32x144xbf16, #tpu.memory_space<vmem>>, %arg2: memref<144x128xbf16, #tpu.memory_space<vmem>>, %arg3: memref<32x128xf32, #tpu.memory_space<vmem>>) attributes {dimension_semantics = [#tpu.dimension_semantics<parallel>], iteration_bounds = array<i64: 1>, scalar_prefetch = 0 : i64, scratch_operands = 0 : i64, tpu.core_type = #tpu.core_type<tc>, window_params = [{pipeline_mode = #tpu.pipeline_mode<synchronous>, transform_indices = @transform_0, window_bounds = array<i64: 32, 144>}, {transform_indices = @transform_1, window_bounds = array<i64: 144, 128>}, {transform_indices = @transform_2, window_bounds = array<i64: 32, 128>}]} {
    %c0 = arith.constant 0 : index
    %c0_0 = arith.constant 0 : index
    %0 = vector.load %arg1[%c0, %c0_0] : memref<32x144xbf16, #tpu.memory_space<vmem>>, vector<32x144xbf16>
    %c0_1 = arith.constant 0 : index
    %c0_2 = arith.constant 0 : index
    %1 = vector.load %arg2[%c0_1, %c0_2] : memref<144x128xbf16, #tpu.memory_space<vmem>>, vector<144x128xbf16>
    %cst = arith.constant dense<0.000000e+00> : vector<32x128xf32>
    %2 = tpu.matmul %0, %1, %cst {dimension_numbers = #tpu.dot_dimension_numbers<[1], [0], [0], [1], [0, 0, 1, 1], [], []>} : vector<32x144xbf16>, vector<144x128xbf16>, vector<32x128xf32> -> vector<32x128xf32>
    %cst_3 = arith.constant 0.000000e+00 : f32
    %3 = vector.broadcast %cst_3 : f32 to vector<32x128xf32>
    %4 = arith.cmpf oge, %2, %3 : vector<32x128xf32>
    %cst_4 = arith.constant 2.000000e-01 : f32
    %5 = vector.broadcast %cst_4 : f32 to vector<32x128xf32>
    %6 = arith.mulf %5, %2 : vector<32x128xf32>
    %7 = arith.select %4, %2, %6 : vector<32x128xi1>, vector<32x128xf32>
    %c0_5 = arith.constant 0 : index
    %c0_6 = arith.constant 0 : index
    %8 = vector.load %arg3[%c0_5, %c0_6] : memref<32x128xf32, #tpu.memory_space<vmem>>, vector<32x128xf32>
    tpu.vector_store %arg3[%c0_5, %c0_6], %7 {strides = array<i32>} : memref<32x128xf32, #tpu.memory_space<vmem>>, vector<32x128xf32>,
    return
  }
  func.func @transform_0(%arg0: i32) -> (i32, i32) {
    %c0_i32 = arith.constant 0 : i32
    %c0_i32_0 = arith.constant 0 : i32
    %c0_i32_1 = arith.constant 0 : i32
    return %c0_i32, %c0_i32_0 : i32, i32
  }
  func.func @transform_1(%arg0: i32) -> (i32, i32) {
    %c0_i32 = arith.constant 0 : i32
    %c0_i32_0 = arith.constant 0 : i32
    return %c0_i32, %arg0 : i32, i32
  }
  func.func @transform_2(%arg0: i32) -> (i32, i32) {
    %c0_i32 = arith.constant 0 : i32
    %c0_i32_0 = arith.constant 0 : i32
    return %c0_i32, %arg0 : i32, i32
  }
}

module attributes {stable_mosaic.version = 11 : i64} {
  func.func @_matmul_act_kernel(%arg0: i32, %arg1: memref<1x512xbf16, #tpu.memory_space<vmem>>, %arg2: memref<512x128xbf16, #tpu.memory_space<vmem>>, %arg3: memref<1x128xf32, #tpu.memory_space<vmem>>) attributes {dimension_semantics = [#tpu.dimension_semantics<parallel>], iteration_bounds = array<i64: 1>, scalar_prefetch = 0 : i64, scratch_operands = 0 : i64, tpu.core_type = #tpu.core_type<tc>, window_params = [{pipeline_mode = #tpu.pipeline_mode<synchronous>, transform_indices = @transform_0, window_bounds = array<i64: 1, 512>}, {transform_indices = @transform_1, window_bounds = array<i64: 512, 128>}, {transform_indices = @transform_2, window_bounds = array<i64: 1, 128>}]} {
    %c0 = arith.constant 0 : index
    %c0_0 = arith.constant 0 : index
    %0 = vector.load %arg1[%c0, %c0_0] : memref<1x512xbf16, #tpu.memory_space<vmem>>, vector<1x512xbf16>
    %c0_1 = arith.constant 0 : index
    %c0_2 = arith.constant 0 : index
    %1 = vector.load %arg2[%c0_1, %c0_2] : memref<512x128xbf16, #tpu.memory_space<vmem>>, vector<512x128xbf16>
    %cst = arith.constant dense<0.000000e+00> : vector<1x128xf32>
    %2 = tpu.matmul %0, %1, %cst {dimension_numbers = #tpu.dot_dimension_numbers<[1], [0], [0], [1], [0, 0, 1, 1], [], []>} : vector<1x512xbf16>, vector<512x128xbf16>, vector<1x128xf32> -> vector<1x128xf32>
    %cst_3 = arith.constant 0.000000e+00 : f32
    %3 = vector.broadcast %cst_3 : f32 to vector<1x128xf32>
    %4 = arith.subf %3, %2 : vector<1x128xf32>
    %5 = math.exp %4 : vector<1x128xf32>
    %cst_4 = arith.constant 1.000000e+00 : f32
    %6 = vector.broadcast %cst_4 : f32 to vector<1x128xf32>
    %7 = arith.addf %6, %5 : vector<1x128xf32>
    %8 = tpu.reciprocal %7 {approx = true} : vector<1x128xf32> -> vector<1x128xf32>
    %c0_5 = arith.constant 0 : index
    %c0_6 = arith.constant 0 : index
    %9 = vector.load %arg3[%c0_5, %c0_6] : memref<1x128xf32, #tpu.memory_space<vmem>>, vector<1x128xf32>
    tpu.vector_store %arg3[%c0_5, %c0_6], %8 {strides = array<i32>} : memref<1x128xf32, #tpu.memory_space<vmem>>, vector<1x128xf32>,
    return
  }
  func.func @transform_0(%arg0: i32) -> (i32, i32) {
    %c0_i32 = arith.constant 0 : i32
    %c0_i32_0 = arith.constant 0 : i32
    %c0_i32_1 = arith.constant 0 : i32
    return %c0_i32, %c0_i32_0 : i32, i32
  }
  func.func @transform_1(%arg0: i32) -> (i32, i32) {
    %c0_i32 = arith.constant 0 : i32
    %c0_i32_0 = arith.constant 0 : i32
    return %c0_i32, %arg0 : i32, i32
  }
  func.func @transform_2(%arg0: i32) -> (i32, i32) {
    %c0_i32 = arith.constant 0 : i32
    %c0_i32_0 = arith.constant 0 : i32
    return %c0_i32, %arg0 : i32, i32
  }
}

</mosaic_0001>

<llo_original>
// kernel: discriminator_forward.4
$region0: #{discriminator_forward.4}
  #allocation0 [shape = 'u32[]', space=smem, size = 0x4, offset = 0x4, fixed_abs, tag = 'smem constant byte address 0x4 - core index']
  #allocation1 [shape = 'u32[144,128]{1,0:T(1,128)}', space=vmem, size = 0x12000, scoped, tag = 'internal scratch']
  %s0 = inlined_call_operand.hbm [shape: bf16[8,48], index: 0, kind: input, shape index: {}]
  %s1 = inlined_call_operand.hbm [shape: bf16[48,512], index: 1, kind: input, shape index: {}]
  %s2 = inlined_call_operand.hbm [shape: f32[8,512], index: 2, kind: output, shape index: {}]
  %s3 = sld [smem:[#allocation0]]
  $region26: #{discriminator_forward.4} parent=0
    _
  %s5 = ssub.s32 1, %s3
  %s6 = scalar_select 0, %s5, %s3
  $region1: #{discriminator_forward.4} parent=0
    #allocation2 [shape = 'u8[2048]{0}', space=vmem, size = 0x800, scoped, tag = 'input window, operand 0, single buffered']
    #allocation3 [shape = 's32[1]{0}', space=sflag, size = 0x4, scoped, tag = 'scoped memory for discriminator_forward.4']
    #allocation4 [shape = 's32[1]{0}', space=sflag, size = 0x4, scoped, tag = 'scoped memory for discriminator_forward.4']
    #allocation5 [shape = 'u8[49152]{0}', space=vmem, size = 0xc000, scoped, tag = 'input window, operand 1, single buffered']
    #allocation6 [shape = 's32[1]{0}', space=sflag, size = 0x4, scoped, tag = 'scoped memory for discriminator_forward.4']
    #allocation7 [shape = 'u8[16384]{0}', space=vmem, size = 0x4000, scoped, tag = 'output window, operand 0, single buffered']
    %7 = vsyncpa [#allocation3], 0
    %8 = vsyncpa [#allocation6], 0
    %9 = vsyncpa [#allocation4], 0
    // Predicated region
    $region2: #{discriminator_forward.4} parent=1 // pred_check
      _
    $region3: #{discriminator_forward.4} parent=1 // pred_check_branch
      %11 = sbr.rel (0) target = $region5
    $region4: #{discriminator_forward.4} parent=1 // pred_region
      %s13 = ssub.s32 64, 64
      %14 = vsyncadd [#allocation3], %s13
      %s16 = sshll.u32 [#allocation2], 4
      %s17 = int_to_ptr.vmem [resolvable:$true] %s16
      %19 = dma.hbm_to_vmem [thread:$0]  %s0, 64, %s17, [#allocation3]
    $region5: #{discriminator_forward.4} parent=1 // pred_fallthru
      _
    // Predicated region
    $region6: #{discriminator_forward.4} parent=1 // pred_check
      _
    $region7: #{discriminator_forward.4} parent=1 // pred_check_branch
      %21 = sbr.rel (0) target = $region9
    $region8: #{discriminator_forward.4} parent=1 // pred_region
      %s23 = ssub.s32 1536, 1536
      %24 = vsyncadd [#allocation6], %s23
      %s25 = sshll.u32 [#allocation5], 4
      %s26 = int_to_ptr.vmem [resolvable:$true] %s25
      %31 = dma.hbm_to_vmem [thread:$0]  %s1, 1536, %s26, [#allocation6], 256, 256, 16
    $region9: #{discriminator_forward.4} parent=1 // pred_fallthru
      _
    // Predicated region
    $region10: #{discriminator_forward.4} parent=1 // pred_check
      _
    $region11: #{discriminator_forward.4} parent=1 // pred_check_branch
      %33 = sbr.rel (0) target = $region13
    $region12: #{discriminator_forward.4} parent=1 // pred_region
      %34 = dma.done [#allocation3], 64
    $region13: #{discriminator_forward.4} parent=1 // pred_fallthru
      _
    // Predicated region
    $region14: #{discriminator_forward.4} parent=1 // pred_check
      _
    $region15: #{discriminator_forward.4} parent=1 // pred_check_branch
      %36 = sbr.rel (0) target = $region17
    $region16: #{discriminator_forward.4} parent=1 // pred_region
      %37 = dma.done [#allocation6], 1536
    $region17: #{discriminator_forward.4} parent=1 // pred_fallthru
      _
    %v39 = vld [vmem:[#allocation2] sm:$0xf]
    %v40 = vld [vmem:[#allocation5] sm:$0xff]
    %v41 = vld [vmem:[#allocation5 + $0x8] sm:$0xff]
    %v42 = vld [vmem:[#allocation5 + $0x10] sm:$0xff]
    %v43 = vld [vmem:[#allocation5 + $0x18] sm:$0xff]
    %v44 = vld [vmem:[#allocation5 + $0x20] sm:$0xff]
    %v45 = vld [vmem:[#allocation5 + $0x28] sm:$0xff]
    %v46 = vld [vmem:[#allocation5 + $0x30] sm:$0xff]
    %v47 = vld [vmem:[#allocation5 + $0x38] sm:$0xff]
    %v48 = vld [vmem:[#allocation5 + $0x40] sm:$0xff]
    %v49 = vld [vmem:[#allocation5 + $0x48] sm:$0xff]
    %v50 = vld [vmem:[#allocation5 + $0x50] sm:$0xff]
    %v51 = vld [vmem:[#allocation5 + $0x58] sm:$0xff]
    %v64 = vunpack.c.l.b16 %v40
    %v65 = vunpack.c.h.b16 %v40
    %v66 = vunpack.c.l.b16 %v41
    %v67 = vunpack.c.h.b16 %v41
    %v68 = vunpack.c.l.b16 %v42
    %v69 = vunpack.c.h.b16 %v42
    %v70 = vunpack.c.l.b16 %v43
    %v71 = vunpack.c.h.b16 %v43
    %v72 = vunpack.c.l.b16 %v44
    %v73 = vunpack.c.h.b16 %v44
    %v74 = vunpack.c.l.b16 %v45
    %v75 = vunpack.c.h.b16 %v45
    %v76 = vunpack.c.l.b16 %v46
    %v77 = vunpack.c.h.b16 %v46
    %v78 = vunpack.c.l.b16 %v47
    %v79 = vunpack.c.h.b16 %v47
    %v80 = vunpack.c.l.b16 %v48
    %v81 = vunpack.c.h.b16 %v48
    %v82 = vunpack.c.l.b16 %v49
    %v83 = vunpack.c.h.b16 %v49
    %v84 = vunpack.c.l.b16 %v50
    %v85 = vunpack.c.h.b16 %v50
    %v86 = vunpack.c.l.b16 %v51
    %v87 = vunpack.c.h.b16 %v51
    %v88 = vpack.c.b16 %v68, %v64
    %v89 = vpack.c.b16 %v69, %v65
    %v90 = vpack.c.b16 %v70, %v66
    %v91 = vpack.c.b16 %v71, %v67
    %v92 = vpack.c.b16 %v76, %v72
    %v93 = vpack.c.b16 %v77, %v73
    %v94 = vpack.c.b16 %v78, %v74
    %v95 = vpack.c.b16 %v79, %v75
    %v96 = vpack.c.b16 %v84, %v80
    %v97 = vpack.c.b16 %v85, %v81
    %v98 = vpack.c.b16 %v86, %v82
    %v99 = vpack.c.b16 %v87, %v83
    %vm112 = vcmask 392192
    %v114 = vsel %vm112, %v39, 0
    %116 = vmatprep.subr.bf16.mxu0 %v89
    %117 = vmatpush1.bf16.msra.mxu0 %v88
    %118 = vmatprep.subr.bf16.mxu0 %v93
    %119 = vmatpush1.bf16.msra.mxu0 %v92
    %120 = vmatprep.subr.bf16.mxu0 %v97
    %121 = vmatpush1.bf16.msra.mxu0 %v96
    %122 = vmatprep.subr.bf16.mxu0 0
    %123 = vmatpush1.bf16.msra.mxu0 0
    %124 = vmatprep.subr.bf16.mxu0 0
    %125 = vmatpush1.bf16.msra.mxu0 0
    %126 = vmatprep.subr.bf16.mxu0 0
    %127 = vmatpush1.bf16.msra.mxu0 0
    %128 = vmatprep.subr.bf16.mxu0 0
    %129 = vmatpush1.bf16.msra.mxu0 0
    %130 = vmatprep.subr.bf16.mxu0 0
    %131 = vmatpush1.bf16.msra.mxu0 0
    %132 = vmatprep.subr.bf16.mxu0 0
    %133 = vmatpush1.bf16.msra.mxu0 0
    %134 = vmatprep.subr.bf16.mxu0 0
    %135 = vmatpush1.bf16.msra.mxu0 0
    %136 = vmatprep.subr.bf16.mxu0 0
    %137 = vmatpush1.bf16.msra.mxu0 0
    %138 = vmatprep.subr.bf16.mxu0 0
    %139 = vmatpush1.bf16.msra.mxu0 0
    %140 = vmatprep.subr.bf16.mxu0 0
    %141 = vmatpush1.bf16.msra.mxu0 0
    %142 = vmatprep.subr.bf16.mxu0 0
    %143 = vmatpush1.bf16.msra.mxu0 0
    %144 = vmatprep.subr.bf16.mxu0 0
    %145 = vmatpush1.bf16.msra.mxu0 0
    %146 = vmatprep.subr.bf16.mxu0 0
    %147 = vmatpush1.bf16.msra.mxu0 0
    %148 = vmatprep.mubr.bf16.mxu0 0
    %149 = vmatmul.mubr.bf16.gmra.mrb[0].mxu0 %v114
    %v150 = vpop.f32.mrb[0].mxu0
    %v151 = vadd.f32 0.0, %v150
    %v152 = vpop.f32.mrb[0].mxu0
    %v153 = vadd.f32 0.0, %v152
    %v154 = vpop.f32.mrb[0].mxu0
    %v155 = vpop.f32.mrb[0].mxu0
    %156 = vdwg.mxu0
    %157 = vmatprep.subr.bf16.mxu0 %v91
    %158 = vmatpush1.bf16.msra.mxu0 %v90
    %159 = vmatprep.subr.bf16.mxu0 %v95
    %160 = vmatpush1.bf16.msra.mxu0 %v94
    %161 = vmatprep.subr.bf16.mxu0 %v99
    %162 = vmatpush1.bf16.msra.mxu0 %v98
    %163 = vmatprep.subr.bf16.mxu0 0
    %164 = vmatpush1.bf16.msra.mxu0 0
    %165 = vmatprep.subr.bf16.mxu0 0
    %166 = vmatpush1.bf16.msra.mxu0 0
    %167 = vmatprep.subr.bf16.mxu0 0
    %168 = vmatpush1.bf16.msra.mxu0 0
    %169 = vmatprep.subr.bf16.mxu0 0
    %170 = vmatpush1.bf16.msra.mxu0 0
    %171 = vmatprep.subr.bf16.mxu0 0
    %172 = vmatpush1.bf16.msra.mxu0 0
    %173 = vmatprep.subr.bf16.mxu0 0
    %174 = vmatpush1.bf16.msra.mxu0 0
    %175 = vmatprep.subr.bf16.mxu0 0
    %176 = vmatpush1.bf16.msra.mxu0 0
    %177 = vmatprep.subr.bf16.mxu0 0
    %178 = vmatpush1.bf16.msra.mxu0 0
    %179 = vmatprep.subr.bf16.mxu0 0
    %180 = vmatpush1.bf16.msra.mxu0 0
    %181 = vmatprep.subr.bf16.mxu0 0
    %182 = vmatpush1.bf16.msra.mxu0 0
    %183 = vmatprep.subr.bf16.mxu0 0
    %184 = vmatpush1.bf16.msra.mxu0 0
    %185 = vmatprep.subr.bf16.mxu0 0
    %186 = vmatpush1.bf16.msra.mxu0 0
    %187 = vmatprep.subr.bf16.mxu0 0
    %188 = vmatpush1.bf16.msra.mxu0 0
    %189 = vmatprep.mubr.bf16.mxu0 0
    %190 = vmatmul.mubr.bf16.gmra.mrb[0].mxu0 %v114
    %v191 = vpop.f32.mrb[0].mxu0
    %v192 = vadd.f32 0.0, %v191
    %v193 = vpop.f32.mrb[0].mxu0
    %v194 = vadd.f32 0.0, %v193
    %v195 = vpop.f32.mrb[0].mxu0
    %v196 = vpop.f32.mrb[0].mxu0
    %197 = vdwg.mxu0
    %vm198 = vcmp.ge.f32.partialorder %v151, 0.0
    %vm199 = vcmp.ge.f32.partialorder %v153, 0.0
    %vm200 = vcmp.ge.f32.partialorder %v192, 0.0
    %vm201 = vcmp.ge.f32.partialorder %v194, 0.0
    %v202 = vmul.f32 %v151, 0.2
    %v203 = vmul.f32 %v153, 0.2
    %v204 = vmul.f32 %v192, 0.2
    %v205 = vmul.f32 %v194, 0.2
    %v206 = vsel %vm198, %v151, %v202
    %v207 = vsel %vm199, %v153, %v203
    %v208 = vsel %vm200, %v192, %v204
    %v209 = vsel %vm201, %v194, %v205
    %210 = vst [vmem:[#allocation7] sm:$0xff] %v206
    %211 = vst [vmem:[#allocation7 + $0x8] sm:$0xff] %v207
    %212 = vst [vmem:[#allocation7 + $0x10] sm:$0xff] %v208
    %213 = vst [vmem:[#allocation7 + $0x18] sm:$0xff] %v209
    // Predicated region
    $region18: #{discriminator_forward.4} parent=1 // pred_check
      _
    $region19: #{discriminator_forward.4} parent=1 // pred_check_branch
      %215 = sbr.rel (0) target = $region21
    $region20: #{discriminator_forward.4} parent=1 // pred_region
      %s217 = ssub.s32 512, 512
      %218 = vsyncadd [#allocation4], %s217
      %s220 = sshll.u32 [#allocation7], 4
      %s221 = int_to_ptr.vmem [resolvable:$true] %s220
      %223 = dma.vmem_to_hbm [thread:$0]  %s221, 512, %s2, [#allocation4]
    $region21: #{discriminator_forward.4} parent=1 // pred_fallthru
      _
    // Predicated region
    $region22: #{discriminator_forward.4} parent=1 // pred_check
      _
    $region23: #{discriminator_forward.4} parent=1 // pred_check_branch
      %225 = sbr.rel (0) target = $region25
    $region24: #{discriminator_forward.4} parent=1 // pred_region
      %226 = dma.done [#allocation4], 512
    $region25: #{discriminator_forward.4} parent=1 // pred_fallthru
      _
    %227 = vsyncpa [#allocation3], 1
    %228 = vsyncpa [#allocation6], 1
    %229 = vsyncpa [#allocation4], 1

// kernel: discriminator_forward.5
$region0: #{discriminator_forward.5}
  #allocation0 [shape = 'u32[]', space=smem, size = 0x4, offset = 0x4, fixed_abs, tag = 'smem constant byte address 0x4 - core index']
  #allocation1 [shape = 'u32[144,128]{1,0:T(1,128)}', space=vmem, size = 0x12000, scoped, tag = 'internal scratch']
  %s0 = inlined_call_operand.hbm [shape: bf16[16,128], index: 0, kind: input, shape index: {}]
  %s1 = inlined_call_operand.hbm [shape: bf16[128,128], index: 1, kind: input, shape index: {}]
  %s2 = inlined_call_operand.hbm [shape: f32[16,128], index: 2, kind: output, shape index: {}]
  %s3 = sld [smem:[#allocation0]]
  $region26: #{discriminator_forward.5} parent=0
    _
  %s5 = ssub.s32 1, %s3
  %s6 = scalar_select 0, %s5, %s3
  $region1: #{discriminator_forward.5} parent=0
    #allocation2 [shape = 'u8[4096]{0}', space=vmem, size = 0x1000, scoped, tag = 'input window, operand 0, single buffered']
    #allocation3 [shape = 's32[1]{0}', space=sflag, size = 0x4, scoped, tag = 'scoped memory for discriminator_forward.5']
    #allocation4 [shape = 's32[1]{0}', space=sflag, size = 0x4, scoped, tag = 'scoped memory for discriminator_forward.5']
    #allocation5 [shape = 'u8[32768]{0}', space=vmem, size = 0x8000, scoped, tag = 'input window, operand 1, single buffered']
    #allocation6 [shape = 's32[1]{0}', space=sflag, size = 0x4, scoped, tag = 'scoped memory for discriminator_forward.5']
    #allocation7 [shape = 'u8[8192]{0}', space=vmem, size = 0x2000, scoped, tag = 'output window, operand 0, single buffered']
    %7 = vsyncpa [#allocation3], 0
    %8 = vsyncpa [#allocation6], 0
    %9 = vsyncpa [#allocation4], 0
    // Predicated region
    $region2: #{discriminator_forward.5} parent=1 // pred_check
      _
    $region3: #{discriminator_forward.5} parent=1 // pred_check_branch
      %11 = sbr.rel (0) target = $region5
    $region4: #{discriminator_forward.5} parent=1 // pred_region
      %s13 = ssub.s32 128, 128
      %14 = vsyncadd [#allocation3], %s13
      %s15 = sshll.u32 [#allocation2], 4
      %s16 = int_to_ptr.vmem [resolvable:$true] %s15
      %21 = dma.hbm_to_vmem [thread:$0]  %s0, 128, %s16, [#allocation3], 64, 64, 4
    $region5: #{discriminator_forward.5} parent=1 // pred_fallthru
      _
    // Predicated region
    $region6: #{discriminator_forward.5} parent=1 // pred_check
      _
    $region7: #{discriminator_forward.5} parent=1 // pred_check_branch
      %23 = sbr.rel (0) target = $region9
    $region8: #{discriminator_forward.5} parent=1 // pred_region
      %s25 = ssub.s32 1024, 1024
      %26 = vsyncadd [#allocation6], %s25
      %s27 = sshll.u32 [#allocation5], 4
      %s28 = int_to_ptr.vmem [resolvable:$true] %s27
      %33 = dma.hbm_to_vmem [thread:$0]  %s1, 1024, %s28, [#allocation6], 64, 64, 4
    $region9: #{discriminator_forward.5} parent=1 // pred_fallthru
      _
    // Predicated region
    $region10: #{discriminator_forward.5} parent=1 // pred_check
      _
    $region11: #{discriminator_forward.5} parent=1 // pred_check_branch
      %35 = sbr.rel (0) target = $region13
    $region12: #{discriminator_forward.5} parent=1 // pred_region
      %36 = dma.done [#allocation3], 128
    $region13: #{discriminator_forward.5} parent=1 // pred_fallthru
      _
    // Predicated region
    $region14: #{discriminator_forward.5} parent=1 // pred_check
      _
    $region15: #{discriminator_forward.5} parent=1 // pred_check_branch
      %38 = sbr.rel (0) target = $region17
    $region16: #{discriminator_forward.5} parent=1 // pred_region
      %39 = dma.done [#allocation6], 1024
    $region17: #{discriminator_forward.5} parent=1 // pred_fallthru
      _
    %v41 = vld [vmem:[#allocation2] sm:$0xf]
    %v42 = vld [vmem:[#allocation2 + $0x4] sm:$0xf]
    %v43 = vld [vmem:[#allocation5] sm:$0xf]
    %v44 = vld [vmem:[#allocation5 + $0x4] sm:$0xf]
    %v45 = vld [vmem:[#allocation5 + $0x8] sm:$0xf]
    %v46 = vld [vmem:[#allocation5 + $0xc] sm:$0xf]
    %v47 = vld [vmem:[#allocation5 + $0x10] sm:$0xf]
    %v48 = vld [vmem:[#allocation5 + $0x14] sm:$0xf]
    %v49 = vld [vmem:[#allocation5 + $0x18] sm:$0xf]
    %v50 = vld [vmem:[#allocation5 + $0x1c] sm:$0xf]
    %v51 = vld [vmem:[#allocation5 + $0x20] sm:$0xf]
    %v52 = vld [vmem:[#allocation5 + $0x24] sm:$0xf]
    %v53 = vld [vmem:[#allocation5 + $0x28] sm:$0xf]
    %v54 = vld [vmem:[#allocation5 + $0x2c] sm:$0xf]
    %v55 = vld [vmem:[#allocation5 + $0x30] sm:$0xf]
    %v56 = vld [vmem:[#allocation5 + $0x34] sm:$0xf]
    %v57 = vld [vmem:[#allocation5 + $0x38] sm:$0xf]
    %v58 = vld [vmem:[#allocation5 + $0x3c] sm:$0xf]
    %v61 = vunpack.c.l.b16 %v41
    %v62 = vunpack.c.l.b16 %v42
    %v63 = vpack.c.b16 %v62, %v61
    %v81 = vunpack.c.l.b16 %v43
    %v82 = vunpack.c.l.b16 %v44
    %v83 = vunpack.c.l.b16 %v45
    %v84 = vunpack.c.l.b16 %v46
    %v85 = vunpack.c.l.b16 %v47
    %v86 = vunpack.c.l.b16 %v48
    %v87 = vunpack.c.l.b16 %v49
    %v88 = vunpack.c.l.b16 %v50
    %v89 = vunpack.c.l.b16 %v51
    %v90 = vunpack.c.l.b16 %v52
    %v91 = vunpack.c.l.b16 %v53
    %v92 = vunpack.c.l.b16 %v54
    %v93 = vunpack.c.l.b16 %v55
    %v94 = vunpack.c.l.b16 %v56
    %v95 = vunpack.c.l.b16 %v57
    %v96 = vunpack.c.l.b16 %v58
    %v97 = vpack.c.b16 %v82, %v81
    %v98 = vpack.c.b16 %v84, %v83
    %v99 = vpack.c.b16 %v86, %v85
    %v100 = vpack.c.b16 %v88, %v87
    %v101 = vpack.c.b16 %v90, %v89
    %v102 = vpack.c.b16 %v92, %v91
    %v103 = vpack.c.b16 %v94, %v93
    %v104 = vpack.c.b16 %v96, %v95
    %113 = vmatprep.subr.bf16.mxu0 0
    %114 = vmatpush1.bf16.msra.mxu0 %v97
    %115 = vmatprep.subr.bf16.mxu0 0
    %116 = vmatpush1.bf16.msra.mxu0 %v98
    %117 = vmatprep.subr.bf16.mxu0 0
    %118 = vmatpush1.bf16.msra.mxu0 %v99
    %119 = vmatprep.subr.bf16.mxu0 0
    %120 = vmatpush1.bf16.msra.mxu0 %v100
    %121 = vmatprep.subr.bf16.mxu0 0
    %122 = vmatpush1.bf16.msra.mxu0 %v101
    %123 = vmatprep.subr.bf16.mxu0 0
    %124 = vmatpush1.bf16.msra.mxu0 %v102
    %125 = vmatprep.subr.bf16.mxu0 0
    %126 = vmatpush1.bf16.msra.mxu0 %v103
    %127 = vmatprep.subr.bf16.mxu0 0
    %128 = vmatpush1.bf16.msra.mxu0 %v104
    %129 = vmatprep.subr.bf16.mxu0 0
    %130 = vmatpush1.bf16.msra.mxu0 0
    %131 = vmatprep.subr.bf16.mxu0 0
    %132 = vmatpush1.bf16.msra.mxu0 0
    %133 = vmatprep.subr.bf16.mxu0 0
    %134 = vmatpush1.bf16.msra.mxu0 0
    %135 = vmatprep.subr.bf16.mxu0 0
    %136 = vmatpush1.bf16.msra.mxu0 0
    %137 = vmatprep.subr.bf16.mxu0 0
    %138 = vmatpush1.bf16.msra.mxu0 0
    %139 = vmatprep.subr.bf16.mxu0 0
    %140 = vmatpush1.bf16.msra.mxu0 0
    %141 = vmatprep.subr.bf16.mxu0 0
    %142 = vmatpush1.bf16.msra.mxu0 0
    %143 = vmatprep.subr.bf16.mxu0 0
    %144 = vmatpush1.bf16.msra.mxu0 0
    %145 = vmatprep.mubr.bf16.mxu0 0
    %146 = vmatmul.mubr.bf16.gmra.mrb[0].mxu0 %v63
    %v147 = vpop.f32.mrb[0].mxu0
    %v148 = vadd.f32 0.0, %v147
    %v149 = vpop.f32.mrb[0].mxu0
    %v150 = vpop.f32.mrb[0].mxu0
    %v151 = vadd.f32 0.0, %v150
    %v152 = vpop.f32.mrb[0].mxu0
    %153 = vdwg.mxu0
    %vm154 = vcmp.ge.f32.partialorder %v148, 0.0
    %vm155 = vcmp.ge.f32.partialorder %v151, 0.0
    %v156 = vmul.f32 %v148, 0.2
    %v157 = vmul.f32 %v151, 0.2
    %v158 = vsel %vm154, %v148, %v156
    %v159 = vsel %vm155, %v151, %v157
    %160 = vst [vmem:[#allocation7] sm:$0xff] %v158
    %161 = vst [vmem:[#allocation7 + $0x8] sm:$0xff] %v159
    // Predicated region
    $region18: #{discriminator_forward.5} parent=1 // pred_check
      _
    $region19: #{discriminator_forward.5} parent=1 // pred_check_branch
      %163 = sbr.rel (0) target = $region21
    $region20: #{discriminator_forward.5} parent=1 // pred_region
      %s165 = ssub.s32 256, 256
      %166 = vsyncadd [#allocation4], %s165
      %s167 = sshll.u32 [#allocation7], 4
      %s168 = int_to_ptr.vmem [resolvable:$true] %s167
      %173 = dma.vmem_to_hbm [thread:$0]  %s168, 256, %s2, [#allocation4], 128, 128, 8
    $region21: #{discriminator_forward.5} parent=1 // pred_fallthru
      _
    // Predicated region
    $region22: #{discriminator_forward.5} parent=1 // pred_check
      _
    $region23: #{discriminator_forward.5} parent=1 // pred_check_branch
      %175 = sbr.rel (0) target = $region25
    $region24: #{discriminator_forward.5} parent=1 // pred_region
      %176 = dma.done [#allocation4], 256
    $region25: #{discriminator_forward.5} parent=1 // pred_fallthru
      _
    %177 = vsyncpa [#allocation3], 1
    %178 = vsyncpa [#allocation6], 1
    %179 = vsyncpa [#allocation4], 1

// kernel: discriminator_forward.6
$region0: #{discriminator_forward.6}
  #allocation0 [shape = 'u32[]', space=smem, size = 0x4, offset = 0x4, fixed_abs, tag = 'smem constant byte address 0x4 - core index']
  #allocation1 [shape = 'u32[144,128]{1,0:T(1,128)}', space=vmem, size = 0x12000, scoped, tag = 'internal scratch']
  %s0 = inlined_call_operand.hbm [shape: bf16[32,144], index: 0, kind: input, shape index: {}]
  %s1 = inlined_call_operand.hbm [shape: bf16[144,32], index: 1, kind: input, shape index: {}]
  %s2 = inlined_call_operand.hbm [shape: f32[32,32], index: 2, kind: output, shape index: {}]
  %s3 = sld [smem:[#allocation0]]
  $region26: #{discriminator_forward.6} parent=0
    _
  %s5 = ssub.s32 1, %s3
  %s6 = scalar_select 0, %s5, %s3
  $region1: #{discriminator_forward.6} parent=0
    #allocation2 [shape = 'u8[16384]{0}', space=vmem, size = 0x4000, scoped, tag = 'input window, operand 0, single buffered']
    #allocation3 [shape = 's32[1]{0}', space=sflag, size = 0x4, scoped, tag = 'scoped memory for discriminator_forward.6']
    #allocation4 [shape = 's32[1]{0}', space=sflag, size = 0x4, scoped, tag = 'scoped memory for discriminator_forward.6']
    #allocation5 [shape = 'u8[36864]{0}', space=vmem, size = 0x9000, scoped, tag = 'input window, operand 1, single buffered']
    #allocation6 [shape = 's32[1]{0}', space=sflag, size = 0x4, scoped, tag = 'scoped memory for discriminator_forward.6']
    #allocation7 [shape = 'u8[16384]{0}', space=vmem, size = 0x4000, scoped, tag = 'output window, operand 0, single buffered']
    %7 = vsyncpa [#allocation3], 0
    %8 = vsyncpa [#allocation6], 0
    %9 = vsyncpa [#allocation4], 0
    // Predicated region
    $region2: #{discriminator_forward.6} parent=1 // pred_check
      _
    $region3: #{discriminator_forward.6} parent=1 // pred_check_branch
      %11 = sbr.rel (0) target = $region5
    $region4: #{discriminator_forward.6} parent=1 // pred_region
      %s13 = ssub.s32 512, 512
      %14 = vsyncadd [#allocation3], %s13
      %s15 = sshll.u32 [#allocation2], 4
      %s16 = int_to_ptr.vmem [resolvable:$true] %s15
      %21 = dma.hbm_to_vmem [thread:$0]  %s0, 512, %s16, [#allocation3], 128, 128, 8
    $region5: #{discriminator_forward.6} parent=1 // pred_fallthru
      _
    // Predicated region
    $region6: #{discriminator_forward.6} parent=1 // pred_check
      _
    $region7: #{discriminator_forward.6} parent=1 // pred_check_branch
      %23 = sbr.rel (0) target = $region9
    $region8: #{discriminator_forward.6} parent=1 // pred_region
      %s25 = ssub.s32 1152, 1152
      %26 = vsyncadd [#allocation6], %s25
      %s27 = sshll.u32 [#allocation5], 4
      %s28 = int_to_ptr.vmem [resolvable:$true] %s27
      %33 = dma.hbm_to_vmem [thread:$0]  %s1, 1152, %s28, [#allocation6], 64, 64, 4
    $region9: #{discriminator_forward.6} parent=1 // pred_fallthru
      _
    // Predicated region
    $region10: #{discriminator_forward.6} parent=1 // pred_check
      _
    $region11: #{discriminator_forward.6} parent=1 // pred_check_branch
      %35 = sbr.rel (0) target = $region13
    $region12: #{discriminator_forward.6} parent=1 // pred_region
      %36 = dma.done [#allocation3], 512
    $region13: #{discriminator_forward.6} parent=1 // pred_fallthru
      _
    // Predicated region
    $region14: #{discriminator_forward.6} parent=1 // pred_check
      _
    $region15: #{discriminator_forward.6} parent=1 // pred_check_branch
      %38 = sbr.rel (0) target = $region17
    $region16: #{discriminator_forward.6} parent=1 // pred_region
      %39 = dma.done [#allocation6], 1152
    $region17: #{discriminator_forward.6} parent=1 // pred_fallthru
      _
    %v41 = vld [vmem:[#allocation2] sm:$0xff]
    %v42 = vld [vmem:[#allocation2 + $0x8] sm:$0xff]
    %v43 = vld [vmem:[#allocation2 + $0x10] sm:$0xff]
    %v44 = vld [vmem:[#allocation2 + $0x18] sm:$0xff]
    %v45 = vld [vmem:[#allocation5] sm:$0xf]
    %v46 = vld [vmem:[#allocation5 + $0x4] sm:$0xf]
    %v47 = vld [vmem:[#allocation5 + $0x8] sm:$0xf]
    %v48 = vld [vmem:[#allocation5 + $0xc] sm:$0xf]
    %v49 = vld [vmem:[#allocation5 + $0x10] sm:$0xf]
    %v50 = vld [vmem:[#allocation5 + $0x14] sm:$0xf]
    %v51 = vld [vmem:[#allocation5 + $0x18] sm:$0xf]
    %v52 = vld [vmem:[#allocation5 + $0x1c] sm:$0xf]
    %v53 = vld [vmem:[#allocation5 + $0x20] sm:$0xf]
    %v54 = vld [vmem:[#allocation5 + $0x24] sm:$0xf]
    %v55 = vld [vmem:[#allocation5 + $0x28] sm:$0xf]
    %v56 = vld [vmem:[#allocation5 + $0x2c] sm:$0xf]
    %v57 = vld [vmem:[#allocation5 + $0x30] sm:$0xf]
    %v58 = vld [vmem:[#allocation5 + $0x34] sm:$0xf]
    %v59 = vld [vmem:[#allocation5 + $0x38] sm:$0xf]
    %v60 = vld [vmem:[#allocation5 + $0x3c] sm:$0xf]
    %v61 = vld [vmem:[#allocation5 + $0x40] sm:$0xf]
    %v62 = vld [vmem:[#allocation5 + $0x44] sm:$0xf]
    %v67 = vunpack.c.l.b16 %v41
    %v68 = vunpack.c.h.b16 %v41
    %v69 = vunpack.c.l.b16 %v42
    %v70 = vunpack.c.h.b16 %v42
    %v71 = vunpack.c.l.b16 %v43
    %v72 = vunpack.c.h.b16 %v43
    %v73 = vunpack.c.l.b16 %v44
    %v74 = vunpack.c.h.b16 %v44
    %v75 = vpack.c.b16 %v69, %v67
    %v76 = vpack.c.b16 %v70, %v68
    %v77 = vpack.c.b16 %v73, %v71
    %v78 = vpack.c.b16 %v74, %v72
    %v99 = vunpack.c.l.b16 %v45
    %v100 = vunpack.c.l.b16 %v46
    %v101 = vunpack.c.l.b16 %v47
    %v102 = vunpack.c.l.b16 %v48
    %v103 = vunpack.c.l.b16 %v49
    %v104 = vunpack.c.l.b16 %v50
    %v105 = vunpack.c.l.b16 %v51
    %v106 = vunpack.c.l.b16 %v52
    %v107 = vunpack.c.l.b16 %v53
    %v108 = vunpack.c.l.b16 %v54
    %v109 = vunpack.c.l.b16 %v55
    %v110 = vunpack.c.l.b16 %v56
    %v111 = vunpack.c.l.b16 %v57
    %v112 = vunpack.c.l.b16 %v58
    %v113 = vunpack.c.l.b16 %v59
    %v114 = vunpack.c.l.b16 %v60
    %v115 = vunpack.c.l.b16 %v61
    %v116 = vunpack.c.l.b16 %v62
    %v117 = vpack.c.b16 %v100, %v99
    %v118 = vpack.c.b16 %v102, %v101
    %v119 = vpack.c.b16 %v104, %v103
    %v120 = vpack.c.b16 %v106, %v105
    %v121 = vpack.c.b16 %v108, %v107
    %v122 = vpack.c.b16 %v110, %v109
    %v123 = vpack.c.b16 %v112, %v111
    %v124 = vpack.c.b16 %v114, %v113
    %v125 = vpack.c.b16 %v116, %v115
    %vm135 = vcmask 130048
    %v137 = vsel %vm135, %v76, 0
    %v140 = vsel %vm135, %v78, 0
    %142 = vmatprep.subr.bf16.mxu0 0
    %143 = vmatpush1.bf16.msra.mxu0 %v117
    %144 = vmatprep.subr.bf16.mxu0 0
    %145 = vmatpush1.bf16.msra.mxu0 %v118
    %146 = vmatprep.subr.bf16.mxu0 0
    %147 = vmatpush1.bf16.msra.mxu0 %v119
    %148 = vmatprep.subr.bf16.mxu0 0
    %149 = vmatpush1.bf16.msra.mxu0 %v120
    %150 = vmatprep.subr.bf16.mxu0 0
    %151 = vmatpush1.bf16.msra.mxu0 %v121
    %152 = vmatprep.subr.bf16.mxu0 0
    %153 = vmatpush1.bf16.msra.mxu0 %v122
    %154 = vmatprep.subr.bf16.mxu0 0
    %155 = vmatpush1.bf16.msra.mxu0 %v123
    %156 = vmatprep.subr.bf16.mxu0 0
    %157 = vmatpush1.bf16.msra.mxu0 %v124
    %158 = vmatprep.subr.bf16.mxu0 0
    %159 = vmatpush1.bf16.msra.mxu0 %v125
    %160 = vmatprep.subr.bf16.mxu0 0
    %161 = vmatpush1.bf16.msra.mxu0 0
    %162 = vmatprep.subr.bf16.mxu0 0
    %163 = vmatpush1.bf16.msra.mxu0 0
    %164 = vmatprep.subr.bf16.mxu0 0
    %165 = vmatpush1.bf16.msra.mxu0 0
    %166 = vmatprep.subr.bf16.mxu0 0
    %167 = vmatpush1.bf16.msra.mxu0 0
    %168 = vmatprep.subr.bf16.mxu0 0
    %169 = vmatpush1.bf16.msra.mxu0 0
    %170 = vmatprep.subr.bf16.mxu0 0
    %171 = vmatpush1.bf16.msra.mxu0 0
    %172 = vmatprep.subr.bf16.mxu0 0
    %173 = vmatpush1.bf16.msra.mxu0 0
    %174 = vmatprep.mubr.bf16.mxu0 %v137
    %175 = vmatmul.mubr.bf16.gmra.mrb[0].mxu0 %v75
    %v176 = vpop.f32.mrb[0].mxu0
    %v177 = vadd.f32 0.0, %v176
    %v178 = vpop.f32.mrb[0].mxu0
    %v179 = vpop.f32.mrb[0].mxu0
    %v180 = vadd.f32 0.0, %v179
    %v181 = vpop.f32.mrb[0].mxu0
    %182 = vmatprep.mubr.bf16.mxu0 %v140
    %183 = vmatmul.mubr.bf16.gmra.mrb[0].mxu0 %v77
    %v184 = vpop.f32.mrb[0].mxu0
    %v185 = vadd.f32 0.0, %v184
    %v186 = vpop.f32.mrb[0].mxu0
    %v187 = vpop.f32.mrb[0].mxu0
    %v188 = vadd.f32 0.0, %v187
    %v189 = vpop.f32.mrb[0].mxu0
    %190 = vdwg.mxu0
    %vm191 = vcmp.ge.f32.partialorder %v177, 0.0
    %vm192 = vcmp.ge.f32.partialorder %v180, 0.0
    %vm193 = vcmp.ge.f32.partialorder %v185, 0.0
    %vm194 = vcmp.ge.f32.partialorder %v188, 0.0
    %v195 = vmul.f32 %v177, 0.2
    %v196 = vmul.f32 %v180, 0.2
    %v197 = vmul.f32 %v185, 0.2
    %v198 = vmul.f32 %v188, 0.2
    %v199 = vsel %vm191, %v177, %v195
    %v200 = vsel %vm192, %v180, %v196
    %v201 = vsel %vm193, %v185, %v197
    %v202 = vsel %vm194, %v188, %v198
    %203 = vst [vmem:[#allocation7] sm:$0xff] %v199
    %204 = vst [vmem:[#allocation7 + $0x8] sm:$0xff] %v200
    %205 = vst [vmem:[#allocation7 + $0x10] sm:$0xff] %v201
    %206 = vst [vmem:[#allocation7 + $0x18] sm:$0xff] %v202
    // Predicated region
    $region18: #{discriminator_forward.6} parent=1 // pred_check
      _
    $region19: #{discriminator_forward.6} parent=1 // pred_check_branch
      %208 = sbr.rel (0) target = $region21
    $region20: #{discriminator_forward.6} parent=1 // pred_region
      %s210 = ssub.s32 512, 512
      %211 = vsyncadd [#allocation4], %s210
      %s212 = sshll.u32 [#allocation7], 4
      %s213 = int_to_ptr.vmem [resolvable:$true] %s212
      %218 = dma.vmem_to_hbm [thread:$0]  %s213, 512, %s2, [#allocation4], 128, 128, 8
    $region21: #{discriminator_forward.6} parent=1 // pred_fallthru
      _
    // Predicated region
    $region22: #{discriminator_forward.6} parent=1 // pred_check
      _
    $region23: #{discriminator_forward.6} parent=1 // pred_check_branch
      %220 = sbr.rel (0) target = $region25
    $region24: #{discriminator_forward.6} parent=1 // pred_region
      %221 = dma.done [#allocation4], 512
    $region25: #{discriminator_forward.6} parent=1 // pred_fallthru
      _
    %222 = vsyncpa [#allocation3], 1
    %223 = vsyncpa [#allocation6], 1
    %224 = vsyncpa [#allocation4], 1

// kernel: discriminator_forward.7
$region0: #{discriminator_forward.7}
  #allocation0 [shape = 'u32[]', space=smem, size = 0x4, offset = 0x4, fixed_abs, tag = 'smem constant byte address 0x4 - core index']
  #allocation1 [shape = 'u32[144,128]{1,0:T(1,128)}', space=vmem, size = 0x12000, scoped, tag = 'internal scratch']
  %s0 = inlined_call_operand.hbm [shape: bf16[1,512], index: 0, kind: input, shape index: {}]
  %s1 = inlined_call_operand.hbm [shape: bf16[512,2], index: 1, kind: input, shape index: {}]
  %s2 = inlined_call_operand.hbm [shape: f32[1,2], index: 2, kind: output, shape index: {}]
  %s3 = sld [smem:[#allocation0]]
  $region26: #{discriminator_forward.7} parent=0
    _
  %s5 = ssub.s32 1, %s3
  %s6 = scalar_select 0, %s5, %s3
  $region1: #{discriminator_forward.7} parent=0
    #allocation2 [shape = 'u8[2048]{0}', space=vmem, size = 0x800, scoped, tag = 'input window, operand 0, single buffered']
    #allocation3 [shape = 's32[1]{0}', space=sflag, size = 0x4, scoped, tag = 'scoped memory for discriminator_forward.7']
    #allocation4 [shape = 's32[1]{0}', space=sflag, size = 0x4, scoped, tag = 'scoped memory for discriminator_forward.7']
    #allocation5 [shape = 'u8[131072]{0}', space=vmem, size = 0x20000, scoped, tag = 'input window, operand 1, single buffered']
    #allocation6 [shape = 's32[1]{0}', space=sflag, size = 0x4, scoped, tag = 'scoped memory for discriminator_forward.7']
    #allocation7 [shape = 'u8[512]{0}', space=vmem, size = 0x400, scoped, tag = 'output window, operand 0, single buffered']
    %7 = vsyncpa [#allocation3], 0
    %8 = vsyncpa [#allocation6], 0
    %9 = vsyncpa [#allocation4], 0
    // Predicated region
    $region2: #{discriminator_forward.7} parent=1 // pred_check
      _
    $region3: #{discriminator_forward.7} parent=1 // pred_check_branch
      %11 = sbr.rel (0) target = $region5
    $region4: #{discriminator_forward.7} parent=1 // pred_region
      %s13 = ssub.s32 64, 64
      %14 = vsyncadd [#allocation3], %s13
      %s16 = sshll.u32 [#allocation2], 4
      %s17 = int_to_ptr.vmem [resolvable:$true] %s16
      %19 = dma.hbm_to_vmem [thread:$0]  %s0, 64, %s17, [#allocation3]
    $region5: #{discriminator_forward.7} parent=1 // pred_fallthru
      _
    // Predicated region
    $region6: #{discriminator_forward.7} parent=1 // pred_check
      _
    $region7: #{discriminator_forward.7} parent=1 // pred_check_branch
      %21 = sbr.rel (0) target = $region9
    $region8: #{discriminator_forward.7} parent=1 // pred_region
      %s23 = ssub.s32 4096, 4096
      %24 = vsyncadd [#allocation6], %s23
      %s25 = sshll.u32 [#allocation5], 4
      %s26 = int_to_ptr.vmem [resolvable:$true] %s25
      %31 = dma.hbm_to_vmem [thread:$0]  %s1, 4096, %s26, [#allocation6], 64, 64, 4
    $region9: #{discriminator_forward.7} parent=1 // pred_fallthru
      _
    // Predicated region
    $region10: #{discriminator_forward.7} parent=1 // pred_check
      _
    $region11: #{discriminator_forward.7} parent=1 // pred_check_branch
      %33 = sbr.rel (0) target = $region13
    $region12: #{discriminator_forward.7} parent=1 // pred_region
      %34 = dma.done [#allocation3], 64
    $region13: #{discriminator_forward.7} parent=1 // pred_fallthru
      _
    // Predicated region
    $region14: #{discriminator_forward.7} parent=1 // pred_check
      _
    $region15: #{discriminator_forward.7} parent=1 // pred_check_branch
      %36 = sbr.rel (0) target = $region17
    $region16: #{discriminator_forward.7} parent=1 // pred_region
      %37 = dma.done [#allocation6], 4096
    $region17: #{discriminator_forward.7} parent=1 // pred_fallthru
      _
    %v39 = vld [vmem:[#allocation2] sm:$0xf]
    %v40 = vld [vmem:[#allocation5] sm:$0xf]
    %v41 = vld [vmem:[#allocation5 + $0x4] sm:$0xf]
    %v42 = vld [vmem:[#allocation5 + $0x8] sm:$0xf]
    %v43 = vld [vmem:[#allocation5 + $0xc] sm:$0xf]
    %v44 = vld [vmem:[#allocation5 + $0x10] sm:$0xf]
    %v45 = vld [vmem:[#allocation5 + $0x14] sm:$0xf]
    %v46 = vld [vmem:[#allocation5 + $0x18] sm:$0xf]
    %v47 = vld [vmem:[#allocation5 + $0x1c] sm:$0xf]
    %v48 = vld [vmem:[#allocation5 + $0x20] sm:$0xf]
    %v49 = vld [vmem:[#allocation5 + $0x24] sm:$0xf]
    %v50 = vld [vmem:[#allocation5 + $0x28] sm:$0xf]
    %v51 = vld [vmem:[#allocation5 + $0x2c] sm:$0xf]
    %v52 = vld [vmem:[#allocation5 + $0x30] sm:$0xf]
    %v53 = vld [vmem:[#allocation5 + $0x34] sm:$0xf]
    %v54 = vld [vmem:[#allocation5 + $0x38] sm:$0xf]
    %v55 = vld [vmem:[#allocation5 + $0x3c] sm:$0xf]
    %v56 = vld [vmem:[#allocation5 + $0x40] sm:$0xf]
    %v57 = vld [vmem:[#allocation5 + $0x44] sm:$0xf]
    %v58 = vld [vmem:[#allocation5 + $0x48] sm:$0xf]
    %v59 = vld [vmem:[#allocation5 + $0x4c] sm:$0xf]
    %v60 = vld [vmem:[#allocation5 + $0x50] sm:$0xf]
    %v61 = vld [vmem:[#allocation5 + $0x54] sm:$0xf]
    %v62 = vld [vmem:[#allocation5 + $0x58] sm:$0xf]
    %v63 = vld [vmem:[#allocation5 + $0x5c] sm:$0xf]
    %v64 = vld [vmem:[#allocation5 + $0x60] sm:$0xf]
    %v65 = vld [vmem:[#allocation5 + $0x64] sm:$0xf]
    %v66 = vld [vmem:[#allocation5 + $0x68] sm:$0xf]
    %v67 = vld [vmem:[#allocation5 + $0x6c] sm:$0xf]
    %v68 = vld [vmem:[#allocation5 + $0x70] sm:$0xf]
    %v69 = vld [vmem:[#allocation5 + $0x74] sm:$0xf]
    %v70 = vld [vmem:[#allocation5 + $0x78] sm:$0xf]
    %v71 = vld [vmem:[#allocation5 + $0x7c] sm:$0xf]
    %v72 = vld [vmem:[#allocation5 + $0x80] sm:$0xf]
    %v73 = vld [vmem:[#allocation5 + $0x84] sm:$0xf]
    %v74 = vld [vmem:[#allocation5 + $0x88] sm:$0xf]
    %v75 = vld [vmem:[#allocation5 + $0x8c] sm:$0xf]
    %v76 = vld [vmem:[#allocation5 + $0x90] sm:$0xf]
    %v77 = vld [vmem:[#allocation5 + $0x94] sm:$0xf]
    %v78 = vld [vmem:[#allocation5 + $0x98] sm:$0xf]
    %v79 = vld [vmem:[#allocation5 + $0x9c] sm:$0xf]
    %v80 = vld [vmem:[#allocation5 + $0xa0] sm:$0xf]
    %v81 = vld [vmem:[#allocation5 + $0xa4] sm:$0xf]
    %v82 = vld [vmem:[#allocation5 + $0xa8] sm:$0xf]
    %v83 = vld [vmem:[#allocation5 + $0xac] sm:$0xf]
    %v84 = vld [vmem:[#allocation5 + $0xb0] sm:$0xf]
    %v85 = vld [vmem:[#allocation5 + $0xb4] sm:$0xf]
    %v86 = vld [vmem:[#allocation5 + $0xb8] sm:$0xf]
    %v87 = vld [vmem:[#allocation5 + $0xbc] sm:$0xf]
    %v88 = vld [vmem:[#allocation5 + $0xc0] sm:$0xf]
    %v89 = vld [vmem:[#allocation5 + $0xc4] sm:$0xf]
    %v90 = vld [vmem:[#allocation5 + $0xc8] sm:$0xf]
    %v91 = vld [vmem:[#allocation5 + $0xcc] sm:$0xf]
    %v92 = vld [vmem:[#allocation5 + $0xd0] sm:$0xf]
    %v93 = vld [vmem:[#allocation5 + $0xd4] sm:$0xf]
    %v94 = vld [vmem:[#allocation5 + $0xd8] sm:$0xf]
    %v95 = vld [vmem:[#allocation5 + $0xdc] sm:$0xf]
    %v96 = vld [vmem:[#allocation5 + $0xe0] sm:$0xf]
    %v97 = vld [vmem:[#allocation5 + $0xe4] sm:$0xf]
    %v98 = vld [vmem:[#allocation5 + $0xe8] sm:$0xf]
    %v99 = vld [vmem:[#allocation5 + $0xec] sm:$0xf]
    %v100 = vld [vmem:[#allocation5 + $0xf0] sm:$0xf]
    %v101 = vld [vmem:[#allocation5 + $0xf4] sm:$0xf]
    %v102 = vld [vmem:[#allocation5 + $0xf8] sm:$0xf]
    %v103 = vld [vmem:[#allocation5 + $0xfc] sm:$0xf]
    %v106 = vunpack.c.l.s4 1966171168
    %v107 = vunpack.c.0.s8 %v106
    %v108 = vlaneseq
    %v109 = vshrl.u32 %v108, 7
    %v110 = vsub.s32 %v107, %v109
    %v111 = vrot.slane %v39, %v110
    %v112 = vcombine.high %v111, %v111
    %v114 = vunpack.c.l.s4 1966171168
    %v115 = vunpack.c.0.s8 %v114
    %v116 = vlaneseq
    %v117 = vshrl.u32 %v116, 7
    %v118 = vsub.s32 %v115, %v117
    %v119 = vrot.slane %v111, %v118
    %v121 = vunpack.c.l.s4 1966171168
    %v122 = vunpack.c.0.s8 %v121
    %v123 = vlaneseq
    %v124 = vshrl.u32 %v123, 7
    %v125 = vsub.s32 %v122, %v124
    %v126 = vrot.slane %v112, %v125
    %v127 = vcombine.high %v119, %v119
    %v128 = vcombine.high %v126, %v126
    %v197 = vunpack.c.l.b16 %v40
    %v198 = vunpack.c.l.b16 %v41
    %v199 = vunpack.c.l.b16 %v42
    %v200 = vunpack.c.l.b16 %v43
    %v201 = vunpack.c.l.b16 %v44
    %v202 = vunpack.c.l.b16 %v45
    %v203 = vunpack.c.l.b16 %v46
    %v204 = vunpack.c.l.b16 %v47
    %v205 = vunpack.c.l.b16 %v48
    %v206 = vunpack.c.l.b16 %v49
    %v207 = vunpack.c.l.b16 %v50
    %v208 = vunpack.c.l.b16 %v51
    %v209 = vunpack.c.l.b16 %v52
    %v210 = vunpack.c.l.b16 %v53
    %v211 = vunpack.c.l.b16 %v54
    %v212 = vunpack.c.l.b16 %v55
    %v213 = vunpack.c.l.b16 %v56
    %v214 = vunpack.c.l.b16 %v57
    %v215 = vunpack.c.l.b16 %v58
    %v216 = vunpack.c.l.b16 %v59
    %v217 = vunpack.c.l.b16 %v60
    %v218 = vunpack.c.l.b16 %v61
    %v219 = vunpack.c.l.b16 %v62
    %v220 = vunpack.c.l.b16 %v63
    %v221 = vunpack.c.l.b16 %v64
    %v222 = vunpack.c.l.b16 %v65
    %v223 = vunpack.c.l.b16 %v66
    %v224 = vunpack.c.l.b16 %v67
    %v225 = vunpack.c.l.b16 %v68
    %v226 = vunpack.c.l.b16 %v69
    %v227 = vunpack.c.l.b16 %v70
    %v228 = vunpack.c.l.b16 %v71
    %v229 = vunpack.c.l.b16 %v72
    %v230 = vunpack.c.l.b16 %v73
    %v231 = vunpack.c.l.b16 %v74
    %v232 = vunpack.c.l.b16 %v75
    %v233 = vunpack.c.l.b16 %v76
    %v234 = vunpack.c.l.b16 %v77
    %v235 = vunpack.c.l.b16 %v78
    %v236 = vunpack.c.l.b16 %v79
    %v237 = vunpack.c.l.b16 %v80
    %v238 = vunpack.c.l.b16 %v81
    %v239 = vunpack.c.l.b16 %v82
    %v240 = vunpack.c.l.b16 %v83
    %v241 = vunpack.c.l.b16 %v84
    %v242 = vunpack.c.l.b16 %v85
    %v243 = vunpack.c.l.b16 %v86
    %v244 = vunpack.c.l.b16 %v87
    %v245 = vunpack.c.l.b16 %v88
    %v246 = vunpack.c.l.b16 %v89
    %v247 = vunpack.c.l.b16 %v90
    %v248 = vunpack.c.l.b16 %v91
    %v249 = vunpack.c.l.b16 %v92
    %v250 = vunpack.c.l.b16 %v93
    %v251 = vunpack.c.l.b16 %v94
    %v252 = vunpack.c.l.b16 %v95
    %v253 = vunpack.c.l.b16 %v96
    %v254 = vunpack.c.l.b16 %v97
    %v255 = vunpack.c.l.b16 %v98
    %v256 = vunpack.c.l.b16 %v99
    %v257 = vunpack.c.l.b16 %v100
    %v258 = vunpack.c.l.b16 %v101
    %v259 = vunpack.c.l.b16 %v102
    %v260 = vunpack.c.l.b16 %v103
    %v261 = vpack.c.b16 %v198, %v197
    %v262 = vpack.c.b16 %v200, %v199
    %v263 = vpack.c.b16 %v202, %v201
    %v264 = vpack.c.b16 %v204, %v203
    %v265 = vpack.c.b16 %v206, %v205
    %v266 = vpack.c.b16 %v208, %v207
    %v267 = vpack.c.b16 %v210, %v209
    %v268 = vpack.c.b16 %v212, %v211
    %v269 = vpack.c.b16 %v214, %v213
    %v270 = vpack.c.b16 %v216, %v215
    %v271 = vpack.c.b16 %v218, %v217
    %v272 = vpack.c.b16 %v220, %v219
    %v273 = vpack.c.b16 %v222, %v221
    %v274 = vpack.c.b16 %v224, %v223
    %v275 = vpack.c.b16 %v226, %v225
    %v276 = vpack.c.b16 %v228, %v227
    %v277 = vpack.c.b16 %v230, %v229
    %v278 = vpack.c.b16 %v232, %v231
    %v279 = vpack.c.b16 %v234, %v233
    %v280 = vpack.c.b16 %v236, %v235
    %v281 = vpack.c.b16 %v238, %v237
    %v282 = vpack.c.b16 %v240, %v239
    %v283 = vpack.c.b16 %v242, %v241
    %v284 = vpack.c.b16 %v244, %v243
    %v285 = vpack.c.b16 %v246, %v245
    %v286 = vpack.c.b16 %v248, %v247
    %v287 = vpack.c.b16 %v250, %v249
    %v288 = vpack.c.b16 %v252, %v251
    %v289 = vpack.c.b16 %v254, %v253
    %v290 = vpack.c.b16 %v256, %v255
    %v291 = vpack.c.b16 %v258, %v257
    %v292 = vpack.c.b16 %v260, %v259
    %325 = vmatprep.subr.bf16.mxu0 0
    %326 = vmatpush1.bf16.msra.mxu0 %v261
    %327 = vmatprep.subr.bf16.mxu0 0
    %328 = vmatpush1.bf16.msra.mxu0 %v262
    %329 = vmatprep.subr.bf16.mxu0 0
    %330 = vmatpush1.bf16.msra.mxu0 %v263
    %331 = vmatprep.subr.bf16.mxu0 0
    %332 = vmatpush1.bf16.msra.mxu0 %v264
    %333 = vmatprep.subr.bf16.mxu0 0
    %334 = vmatpush1.bf16.msra.mxu0 %v265
    %335 = vmatprep.subr.bf16.mxu0 0
    %336 = vmatpush1.bf16.msra.mxu0 %v266
    %337 = vmatprep.subr.bf16.mxu0 0
    %338 = vmatpush1.bf16.msra.mxu0 %v267
    %339 = vmatprep.subr.bf16.mxu0 0
    %340 = vmatpush1.bf16.msra.mxu0 %v268
    %341 = vmatprep.subr.bf16.mxu0 0
    %342 = vmatpush1.bf16.msra.mxu0 %v269
    %343 = vmatprep.subr.bf16.mxu0 0
    %344 = vmatpush1.bf16.msra.mxu0 %v270
    %345 = vmatprep.subr.bf16.mxu0 0
    %346 = vmatpush1.bf16.msra.mxu0 %v271
    %347 = vmatprep.subr.bf16.mxu0 0
    %348 = vmatpush1.bf16.msra.mxu0 %v272
    %349 = vmatprep.subr.bf16.mxu0 0
    %350 = vmatpush1.bf16.msra.mxu0 %v273
    %351 = vmatprep.subr.bf16.mxu0 0
    %352 = vmatpush1.bf16.msra.mxu0 %v274
    %353 = vmatprep.subr.bf16.mxu0 0
    %354 = vmatpush1.bf16.msra.mxu0 %v275
    %355 = vmatprep.subr.bf16.mxu0 0
    %356 = vmatpush1.bf16.msra.mxu0 %v276
    %357 = vmatprep.mubr.bf16.mxu0 %v126
    %358 = vmatmul.mubr.bf16.gmra.mrb[0].mxu0 %v119
    %v359 = vpop.f32.mrb[0].mxu0
    %v360 = vadd.f32 0.0, %v359
    %v361 = vpop.f32.mrb[0].mxu0
    %v362 = vpop.f32.mrb[0].mxu0
    %v363 = vpop.f32.mrb[0].mxu0
    %364 = vdwg.mxu0
    %365 = vmatprep.subr.bf16.mxu0 0
    %366 = vmatpush1.bf16.msra.mxu0 %v277
    %367 = vmatprep.subr.bf16.mxu0 0
    %368 = vmatpush1.bf16.msra.mxu0 %v278
    %369 = vmatprep.subr.bf16.mxu0 0
    %370 = vmatpush1.bf16.msra.mxu0 %v279
    %371 = vmatprep.subr.bf16.mxu0 0
    %372 = vmatpush1.bf16.msra.mxu0 %v280
    %373 = vmatprep.subr.bf16.mxu0 0
    %374 = vmatpush1.bf16.msra.mxu0 %v281
    %375 = vmatprep.subr.bf16.mxu0 0
    %376 = vmatpush1.bf16.msra.mxu0 %v282
    %377 = vmatprep.subr.bf16.mxu0 0
    %378 = vmatpush1.bf16.msra.mxu0 %v283
    %379 = vmatprep.subr.bf16.mxu0 0
    %380 = vmatpush1.bf16.msra.mxu0 %v284
    %381 = vmatprep.subr.bf16.mxu0 0
    %382 = vmatpush1.bf16.msra.mxu0 %v285
    %383 = vmatprep.subr.bf16.mxu0 0
    %384 = vmatpush1.bf16.msra.mxu0 %v286
    %385 = vmatprep.subr.bf16.mxu0 0
    %386 = vmatpush1.bf16.msra.mxu0 %v287
    %387 = vmatprep.subr.bf16.mxu0 0
    %388 = vmatpush1.bf16.msra.mxu0 %v288
    %389 = vmatprep.subr.bf16.mxu0 0
    %390 = vmatpush1.bf16.msra.mxu0 %v289
    %391 = vmatprep.subr.bf16.mxu0 0
    %392 = vmatpush1.bf16.msra.mxu0 %v290
    %393 = vmatprep.subr.bf16.mxu0 0
    %394 = vmatpush1.bf16.msra.mxu0 %v291
    %395 = vmatprep.subr.bf16.mxu0 0
    %396 = vmatpush1.bf16.msra.mxu0 %v292
    %397 = vmatprep.mubr.bf16.mxu0 %v128
    %398 = vmatmul.mubr.bf16.gmra.mrb[0].mxu0 %v127
    %v399 = vpop.f32.mrb[0].mxu0
    %v400 = vadd.f32 %v360, %v399
    %v401 = vpop.f32.mrb[0].mxu0
    %v402 = vpop.f32.mrb[0].mxu0
    %v403 = vpop.f32.mrb[0].mxu0
    %404 = vdwg.mxu0
    %v405 = vsub.f32 0.0, %v400
    %v406 = vmul.f32 %v405, 1.442695
    %v407 = vpow.pop %v406
    %v408 = vadd.f32 %v407, 1.0
    %v409 = vrcp.pop %v408
    %410 = vst [vmem:[#allocation7] sm:$0x1] %v409
    // Predicated region
    $region18: #{discriminator_forward.7} parent=1 // pred_check
      _
    $region19: #{discriminator_forward.7} parent=1 // pred_check_branch
      %412 = sbr.rel (0) target = $region21
    $region20: #{discriminator_forward.7} parent=1 // pred_region
      %s414 = ssub.s32 16, 16
      %415 = vsyncadd [#allocation4], %s414
      %s417 = sshll.u32 [#allocation7], 4
      %s418 = int_to_ptr.vmem [resolvable:$true] %s417
      %420 = dma.vmem_to_hbm [thread:$0]  %s418, 16, %s2, [#allocation4]
    $region21: #{discriminator_forward.7} parent=1 // pred_fallthru
      _
    // Predicated region
    $region22: #{discriminator_forward.7} parent=1 // pred_check
      _
    $region23: #{discriminator_forward.7} parent=1 // pred_check_branch
      %422 = sbr.rel (0) target = $region25
    $region24: #{discriminator_forward.7} parent=1 // pred_region
      %423 = dma.done [#allocation4], 16
    $region25: #{discriminator_forward.7} parent=1 // pred_fallthru
      _
    %424 = vsyncpa [#allocation3], 1
    %425 = vsyncpa [#allocation6], 1
    %426 = vsyncpa [#allocation4], 1

</llo_original>
